<compile_context>
chip_gen: v7x
topology: tpu7x:2x2x1
jax: 0.10.0
libtpu: 0.0.40
codegen_flags: <defaults>
</compile_context>

<pallas_src>
import functools

import jax
import jax.numpy as jnp
from jax.experimental import pallas as pl
from jax.experimental.pallas import tpu as pltpu

DICE_EPS = 1e-7  # smp.losses.DiceLoss default eps (smooth=0.0)


def _combo_kernel(logits_ref, labels_ref,
                  inter_ref, psum_ref, tcnt_ref, ce_ref,
                  pt_acc, p_acc, t_acc, ce_acc,
                  *, tile_n, valid_n, masked):
    """One grid step: softmax + partial sums over a (C, tile_n) slab of one image."""
    i = pl.program_id(1)

    @pl.when(i == 0)
    def _zero():
        pt_acc[...] = jnp.zeros_like(pt_acc)
        p_acc[...] = jnp.zeros_like(p_acc)
        t_acc[...] = jnp.zeros_like(t_acc)
        ce_acc[...] = jnp.zeros_like(ce_acc)

    x = logits_ref[0].astype(jnp.float32)            # (C, T) logits (upcast in-kernel)
    lbl = labels_ref[0]                              # (1, T) int32 labels

    # one-hot targets via class-index iota: t[c, n] = (label[n] == c)
    cls_ids = jax.lax.broadcasted_iota(jnp.int32, x.shape, 0)
    t = (lbl == cls_ids).astype(jnp.float32)         # (C, T)

    # per-pixel softmax / log-softmax over the class (sublane) axis
    m = jnp.max(x, axis=0, keepdims=True)            # (1, T)
    e = jnp.exp(x - m)                               # (C, T)  EUP
    s = jnp.sum(e, axis=0, keepdims=True)            # (1, T)
    p = e / s                                        # (C, T)  softmax probs
    lse = jnp.log(s) + m                             # (1, T)  EUP
    x_true = jnp.sum(x * t, axis=0, keepdims=True)   # (1, T)  logit at true class
    ce = lse - x_true                                # (1, T)  per-pixel CE

    if masked:  # only generated when H*W had to be padded to a multiple of 128
        lane = jax.lax.broadcasted_iota(jnp.int32, (1, tile_n), 1)
        valid = ((i * tile_n + lane) < valid_n).astype(jnp.float32)
        t = t * valid
        p = p * valid
        ce = ce * valid

    # lane-wide VPU accumulation (no per-step cross-lane reduce, better numerics)
    pt_acc[...] += p * t
    p_acc[...] += p
    t_acc[...] += t
    ce_acc[...] += ce

    @pl.when(i == pl.num_programs(1) - 1)
    def _finalize():
        inter_ref[0] = jnp.sum(pt_acc[...], axis=1, keepdims=True)   # (C, 1)
        psum_ref[0] = jnp.sum(p_acc[...], axis=1, keepdims=True)     # (C, 1)
        tcnt_ref[0] = jnp.sum(t_acc[...], axis=1, keepdims=True)     # (C, 1)
        ce_ref[0] = jnp.sum(ce_acc[...], axis=1, keepdims=True)      # (1, 1)


def _choose_tile(hw, c, lane_cap=32768, vmem_budget_bytes=4 * 1024 * 1024):
    """Largest lane tile (multiple of 128) dividing the (possibly padded) pixel
    count, keeping the double-buffered logits block to a few MiB so the same
    tile fits v5e/v6e (128 MiB VMEM) and v7x (64 MiB VMEM)."""
    cap = (vmem_budget_bytes // (4 * max(c, 1))) // 128 * 128
    cap = max(128, min(lane_cap, cap))

    def _largest_divisor(n):
        best = 0
        for t in range(128, min(n, cap) + 1, 128):
            if n % t == 0:
                best = t
        return best

    tile = _largest_divisor(hw)
    if tile:
        return tile, hw
    hw_p = ((hw + 127) // 128) * 128
    return max(128, _largest_divisor(hw_p)), hw_p


def combo_loss(y_pred, y_true, *, dice_weight=0.5, ce_weight=0.5, tile_n=None):
    """ComboLoss forward.

    y_pred: (B, C, H, W) float logits (any float dtype; upcast happens in-kernel).
    y_true: (B, H, W) integer class ids.
    """
    B, C, H, W = y_pred.shape
    HW = H * W

    if tile_n is None:
        tile_n, hw_p = _choose_tile(HW, C)
    else:
        assert tile_n % 128 == 0
        hw_p = pl.cdiv(HW, tile_n) * tile_n

    # Native NCHW layout: these reshapes are free (contiguous). No transpose,
    # no host-side f32 cast (keeps HBM traffic minimal for bf16 inputs).
    logits = y_pred.reshape(B, C, HW)
    labels = y_true.astype(jnp.int32).reshape(B, 1, HW)

    masked = hw_p != HW
    if masked:
        # TODO(synk): padding costs one extra HBM pass; only hit when H*W is not
        # a multiple of 128. Padded pixels are masked out inside the kernel.
        logits = jnp.pad(logits, ((0, 0), (0, 0), (0, hw_p - HW)))
        labels = jnp.pad(labels, ((0, 0), (0, 0), (0, hw_p - HW)))

    n_tiles = hw_p // tile_n
    kernel = functools.partial(_combo_kernel, tile_n=tile_n, valid_n=HW, masked=masked)

    inter_b, psum_b, tcnt_b, ce_b = pl.pallas_call(
        kernel,
        out_shape=(
            jax.ShapeDtypeStruct((B, C, 1), jnp.float32),
            jax.ShapeDtypeStruct((B, C, 1), jnp.float32),
            jax.ShapeDtypeStruct((B, C, 1), jnp.float32),
            jax.ShapeDtypeStruct((B, 1, 1), jnp.float32),
        ),
        grid_spec=pltpu.PrefetchScalarGridSpec(
            num_scalar_prefetch=0,
            grid=(B, n_tiles),
            in_specs=[
                pl.BlockSpec((1, C, tile_n), lambda b, i: (b, 0, i)),
                pl.BlockSpec((1, 1, tile_n), lambda b, i: (b, 0, i)),
            ],
            out_specs=[
                pl.BlockSpec((1, C, 1), lambda b, i: (b, 0, 0)),
                pl.BlockSpec((1, C, 1), lambda b, i: (b, 0, 0)),
                pl.BlockSpec((1, C, 1), lambda b, i: (b, 0, 0)),
                pl.BlockSpec((1, 1, 1), lambda b, i: (b, 0, 0)),
            ],
            scratch_shapes=[
                pltpu.VMEM((C, tile_n), jnp.float32),
                pltpu.VMEM((C, tile_n), jnp.float32),
                pltpu.VMEM((C, tile_n), jnp.float32),
                pltpu.VMEM((1, tile_n), jnp.float32),
            ],
        ),
        compiler_params=pltpu.CompilerParams(
            # batch axis "parallel" (per-batch output blocks -> v7x 2-TC sharding),
            # pixel-tile axis is the in-VMEM reduction.
            dimension_semantics=("parallel", "arbitrary"),
        ),
    )(logits, labels)

    # Tiny JAX epilogue combining per-batch partial sums.
    inter = jnp.sum(inter_b[:, :, 0], axis=0)        # (C,)
    psum = jnp.sum(psum_b[:, :, 0], axis=0)          # (C,)
    tcnt = jnp.sum(tcnt_b[:, :, 0], axis=0)          # (C,)

    ce_loss = jnp.sum(ce_b) / (B * HW)

    card = psum + tcnt
    score = (2.0 * inter) / jnp.maximum(card, DICE_EPS)
    present = (tcnt > 0).astype(jnp.float32)
    dice_loss = jnp.mean((1.0 - score) * present)

    return dice_weight * dice_loss + ce_weight * ce_loss


def _combo_ref(y_pred, y_true, dice_weight=0.5, ce_weight=0.5):
    """Pure-JAX reference mirroring nn.CrossEntropyLoss + smp DiceLoss(multiclass)."""
    B, C, H, W = y_pred.shape
    logits = y_pred.astype(jnp.float32).reshape(B, C, H * W)
    labels = y_true.reshape(B, H * W)

    logp = jax.nn.log_softmax(logits, axis=1)
    ce = -jnp.take_along_axis(logp, labels[:, None, :], axis=1)[:, 0, :]
    ce_loss = jnp.mean(ce)

    p = jnp.exp(logp)
    t = jax.nn.one_hot(labels, C, axis=1, dtype=jnp.float32)
    inter = jnp.sum(p * t, axis=(0, 2))
    card = jnp.sum(p + t, axis=(0, 2))
    score = (2.0 * inter) / jnp.maximum(card, DICE_EPS)
    present = (jnp.sum(t, axis=(0, 2)) > 0).astype(jnp.float32)
    dice_loss = jnp.mean((1.0 - score) * present)

    return dice_weight * dice_loss + ce_weight * ce_loss


if __name__ == "__main__":
    key = jax.random.PRNGKey(0)
    k_pred, k_true = jax.random.split(key)

    B, C, H, W = 2, 4, 16, 16
    y_pred = jax.random.normal(k_pred, (B, C, H, W), dtype=jnp.float32)
    y_true = jax.random.randint(k_true, (B, H, W), 0, C, dtype=jnp.int32)

    out = combo_loss(y_pred, y_true)
    out = jax.block_until_ready(out)

    ref = _combo_ref(y_pred, y_true)
    assert jnp.allclose(out, ref, rtol=1e-5, atol=1e-5), (out, ref)

    print("KERNEL_OK")
</pallas_src>

<mosaic_0001>
module attributes {stable_mosaic.version = 11 : i64} {
  func.func @_combo_kernel(%arg0: i32, %arg1: i32, %arg2: memref<1x4x256xf32, #tpu.memory_space<vmem>>, %arg3: memref<1x1x256xi32, #tpu.memory_space<vmem>>, %arg4: memref<1x4x1xf32, #tpu.memory_space<vmem>>, %arg5: memref<1x4x1xf32, #tpu.memory_space<vmem>>, %arg6: memref<1x4x1xf32, #tpu.memory_space<vmem>>, %arg7: memref<1x1x1xf32, #tpu.memory_space<vmem>>, %arg8: memref<4x256xf32, #tpu.memory_space<vmem>>, %arg9: memref<4x256xf32, #tpu.memory_space<vmem>>, %arg10: memref<4x256xf32, #tpu.memory_space<vmem>>, %arg11: memref<1x256xf32, #tpu.memory_space<vmem>>) attributes {dimension_semantics = [#tpu.dimension_semantics<parallel>, #tpu.dimension_semantics<arbitrary>], iteration_bounds = array<i64: 2, 1>, scalar_prefetch = 0 : i64, scratch_operands = 4 : i64, tpu.core_type = #tpu.core_type<tc>, window_params = [{transform_indices = @transform_0, window_bounds = array<i64: 1, 4, 256>}, {transform_indices = @transform_1, window_bounds = array<i64: 1, 1, 256>}, {transform_indices = @transform_2, window_bounds = array<i64: 1, 4, 1>}, {transform_indices = @transform_3, window_bounds = array<i64: 1, 4, 1>}, {transform_indices = @transform_4, window_bounds = array<i64: 1, 4, 1>}, {transform_indices = @transform_5, window_bounds = array<i64: 1, 1, 1>}]} {
    %c0_i32 = arith.constant 0 : i32
    %0 = arith.cmpi eq, %arg1, %c0_i32 : i32
    %1 = arith.extui %0 : i1 to i32
    %c0_i32_0 = arith.constant 0 : i32
    %2 = arith.cmpi ne, %1, %c0_i32_0 : i32
    scf.if %2 {
      %cst_26 = arith.constant 0.000000e+00 : f32
      %43 = vector.broadcast %cst_26 : f32 to vector<4x256xf32>
      %c0_27 = arith.constant 0 : index
      %c0_28 = arith.constant 0 : index
      %44 = vector.load %arg8[%c0_27, %c0_28] : memref<4x256xf32, #tpu.memory_space<vmem>>, vector<4x256xf32>
      tpu.vector_store %arg8[%c0_27, %c0_28], %43 {strides = array<i32>} : memref<4x256xf32, #tpu.memory_space<vmem>>, vector<4x256xf32>,
      %cst_29 = arith.constant 0.000000e+00 : f32
      %45 = vector.broadcast %cst_29 : f32 to vector<4x256xf32>
      %c0_30 = arith.constant 0 : index
      %c0_31 = arith.constant 0 : index
      %46 = vector.load %arg9[%c0_30, %c0_31] : memref<4x256xf32, #tpu.memory_space<vmem>>, vector<4x256xf32>
      tpu.vector_store %arg9[%c0_30, %c0_31], %45 {strides = array<i32>} : memref<4x256xf32, #tpu.memory_space<vmem>>, vector<4x256xf32>,
      %cst_32 = arith.constant 0.000000e+00 : f32
      %47 = vector.broadcast %cst_32 : f32 to vector<4x256xf32>
      %c0_33 = arith.constant 0 : index
      %c0_34 = arith.constant 0 : index
      %48 = vector.load %arg10[%c0_33, %c0_34] : memref<4x256xf32, #tpu.memory_space<vmem>>, vector<4x256xf32>
      tpu.vector_store %arg10[%c0_33, %c0_34], %47 {strides = array<i32>} : memref<4x256xf32, #tpu.memory_space<vmem>>, vector<4x256xf32>,
      %cst_35 = arith.constant 0.000000e+00 : f32
      %49 = vector.broadcast %cst_35 : f32 to vector<1x256xf32>
      %c0_36 = arith.constant 0 : index
      %c0_37 = arith.constant 0 : index
      %50 = vector.load %arg11[%c0_36, %c0_37] : memref<1x256xf32, #tpu.memory_space<vmem>>, vector<1x256xf32>
      tpu.vector_store %arg11[%c0_36, %c0_37], %49 {strides = array<i32>} : memref<1x256xf32, #tpu.memory_space<vmem>>, vector<1x256xf32>,
    } else {
    }
    %c0 = arith.constant 0 : index
    %c0_1 = arith.constant 0 : index
    %c0_2 = arith.constant 0 : index
    %3 = vector.load %arg2[%c0, %c0_1, %c0_2] : memref<1x4x256xf32, #tpu.memory_space<vmem>>, vector<1x4x256xf32>
    %4 = vector.shape_cast %3 : vector<1x4x256xf32> to vector<4x256xf32>
    %c0_3 = arith.constant 0 : index
    %c0_4 = arith.constant 0 : index
    %c0_5 = arith.constant 0 : index
    %5 = vector.load %arg3[%c0_3, %c0_4, %c0_5] : memref<1x1x256xi32, #tpu.memory_space<vmem>>, vector<1x1x256xi32>
    %6 = vector.shape_cast %5 : vector<1x1x256xi32> to vector<1x256xi32>
    %7 = tpu.iota {dimensions = array<i32: 0>} : vector<4x256xi32>
    %8 = vector.broadcast %6 : vector<1x256xi32> to vector<4x256xi32>
    %9 = arith.cmpi eq, %8, %7 : vector<4x256xi32>
    %10 = arith.extui %9 : vector<4x256xi1> to vector<4x256xi32>
    %11 = arith.sitofp %10 : vector<4x256xi32> to vector<4x256xf32>
    %cst = arith.constant dense<0xFF800000> : vector<256xf32>
    %12 = vector.multi_reduction <maximumf>, %4, %cst [0] : vector<4x256xf32> to vector<256xf32>
    %13 = vector.shape_cast %12 : vector<256xf32> to vector<1x256xf32>
    %14 = vector.broadcast %13 : vector<1x256xf32> to vector<4x256xf32>
    %15 = arith.subf %4, %14 : vector<4x256xf32>
    %16 = math.exp %15 : vector<4x256xf32>
    %cst_6 = arith.constant dense<0.000000e+00> : vector<256xf32>
    %17 = vector.multi_reduction <add>, %16, %cst_6 [0] : vector<4x256xf32> to vector<256xf32>
    %18 = vector.shape_cast %17 : vector<256xf32> to vector<1x256xf32>
    %19 = vector.broadcast %18 : vector<1x256xf32> to vector<4x256xf32>
    %20 = arith.divf %16, %19 : vector<4x256xf32>
    %21 = math.log %18 : vector<1x256xf32>
    %22 = arith.addf %21, %13 : vector<1x256xf32>
    %23 = arith.mulf %4, %11 : vector<4x256xf32>
    %cst_7 = arith.constant dense<0.000000e+00> : vector<256xf32>
    %24 = vector.multi_reduction <add>, %23, %cst_7 [0] : vector<4x256xf32> to vector<256xf32>
    %25 = vector.shape_cast %24 : vector<256xf32> to vector<1x256xf32>
    %26 = arith.subf %22, %25 : vector<1x256xf32>
    %c0_8 = arith.constant 0 : index
    %c0_9 = arith.constant 0 : index
    %27 = vector.load %arg8[%c0_8, %c0_9] : memref<4x256xf32, #tpu.memory_space<vmem>>, vector<4x256xf32>
    %28 = arith.mulf %20, %11 : vector<4x256xf32>
    %29 = arith.addf %27, %28 : vector<4x256xf32>
    %c0_10 = arith.constant 0 : index
    %c0_11 = arith.constant 0 : index
    %30 = vector.load %arg8[%c0_10, %c0_11] : memref<4x256xf32, #tpu.memory_space<vmem>>, vector<4x256xf32>
    tpu.vector_store %arg8[%c0_10, %c0_11], %29 {strides = array<i32>} : memref<4x256xf32, #tpu.memory_space<vmem>>, vector<4x256xf32>,
    %c0_12 = arith.constant 0 : index
    %c0_13 = arith.constant 0 : index
    %31 = vector.load %arg9[%c0_12, %c0_13] : memref<4x256xf32, #tpu.memory_space<vmem>>, vector<4x256xf32>
    %32 = arith.addf %31, %20 : vector<4x256xf32>
    %c0_14 = arith.constant 0 : index
    %c0_15 = arith.constant 0 : index
    %33 = vector.load %arg9[%c0_14, %c0_15] : memref<4x256xf32, #tpu.memory_space<vmem>>, vector<4x256xf32>
    tpu.vector_store %arg9[%c0_14, %c0_15], %32 {strides = array<i32>} : memref<4x256xf32, #tpu.memory_space<vmem>>, vector<4x256xf32>,
    %c0_16 = arith.constant 0 : index
    %c0_17 = arith.constant 0 : index
    %34 = vector.load %arg10[%c0_16, %c0_17] : memref<4x256xf32, #tpu.memory_space<vmem>>, vector<4x256xf32>
    %35 = arith.addf %34, %11 : vector<4x256xf32>
    %c0_18 = arith.constant 0 : index
    %c0_19 = arith.constant 0 : index
    %36 = vector.load %arg10[%c0_18, %c0_19] : memref<4x256xf32, #tpu.memory_space<vmem>>, vector<4x256xf32>
    tpu.vector_store %arg10[%c0_18, %c0_19], %35 {strides = array<i32>} : memref<4x256xf32, #tpu.memory_space<vmem>>, vector<4x256xf32>,
    %c0_20 = arith.constant 0 : index
    %c0_21 = arith.constant 0 : index
    %37 = vector.load %arg11[%c0_20, %c0_21] : memref<1x256xf32, #tpu.memory_space<vmem>>, vector<1x256xf32>
    %38 = arith.addf %37, %26 : vector<1x256xf32>
    %c0_22 = arith.constant 0 : index
    %c0_23 = arith.constant 0 : index
    %39 = vector.load %arg11[%c0_22, %c0_23] : memref<1x256xf32, #tpu.memory_space<vmem>>, vector<1x256xf32>
    tpu.vector_store %arg11[%c0_22, %c0_23], %38 {strides = array<i32>} : memref<1x256xf32, #tpu.memory_space<vmem>>, vector<1x256xf32>,
    %c0_i32_24 = arith.constant 0 : i32
    %40 = arith.cmpi eq, %arg1, %c0_i32_24 : i32
    %41 = arith.extui %40 : i1 to i32
    %c0_i32_25 = arith.constant 0 : i32
    %42 = arith.cmpi ne, %41, %c0_i32_25 : i32
    scf.if %42 {
      %c0_26 = arith.constant 0 : index
      %c0_27 = arith.constant 0 : index
      %43 = vector.load %arg8[%c0_26, %c0_27] : memref<4x256xf32, #tpu.memory_space<vmem>>, vector<4x256xf32>
      %cst_28 = arith.constant dense<0.000000e+00> : vector<4xf32>
      %44 = vector.multi_reduction <add>, %43, %cst_28 [1] : vector<4x256xf32> to vector<4xf32>
      %45 = vector.shape_cast %44 : vector<4xf32> to vector<4x1xf32>
      %c0_29 = arith.constant 0 : index
      %c0_30 = arith.constant 0 : index
      %c0_31 = arith.constant 0 : index
      %46 = vector.load %arg4[%c0_29, %c0_30, %c0_31] : memref<1x4x1xf32, #tpu.memory_space<vmem>>, vector<1x4x1xf32>
      %47 = vector.shape_cast %46 : vector<1x4x1xf32> to vector<4x1xf32>
      %48 = vector.shape_cast %45 : vector<4x1xf32> to vector<1x4x1xf32>
      tpu.vector_store %arg4[%c0_29, %c0_30, %c0_31], %48 {strides = array<i32>} : memref<1x4x1xf32, #tpu.memory_space<vmem>>, vector<1x4x1xf32>,
      %c0_32 = arith.constant 0 : index
      %c0_33 = arith.constant 0 : index
      %49 = vector.load %arg9[%c0_32, %c0_33] : memref<4x256xf32, #tpu.memory_space<vmem>>, vector<4x256xf32>
      %cst_34 = arith.constant dense<0.000000e+00> : vector<4xf32>
      %50 = vector.multi_reduction <add>, %49, %cst_34 [1] : vector<4x256xf32> to vector<4xf32>
      %51 = vector.shape_cast %50 : vector<4xf32> to vector<4x1xf32>
      %c0_35 = arith.constant 0 : index
      %c0_36 = arith.constant 0 : index
      %c0_37 = arith.constant 0 : index
      %52 = vector.load %arg5[%c0_35, %c0_36, %c0_37] : memref<1x4x1xf32, #tpu.memory_space<vmem>>, vector<1x4x1xf32>
      %53 = vector.shape_cast %52 : vector<1x4x1xf32> to vector<4x1xf32>
      %54 = vector.shape_cast %51 : vector<4x1xf32> to vector<1x4x1xf32>
      tpu.vector_store %arg5[%c0_35, %c0_36, %c0_37], %54 {strides = array<i32>} : memref<1x4x1xf32, #tpu.memory_space<vmem>>, vector<1x4x1xf32>,
      %c0_38 = arith.constant 0 : index
      %c0_39 = arith.constant 0 : index
      %55 = vector.load %arg10[%c0_38, %c0_39] : memref<4x256xf32, #tpu.memory_space<vmem>>, vector<4x256xf32>
      %cst_40 = arith.constant dense<0.000000e+00> : vector<4xf32>
      %56 = vector.multi_reduction <add>, %55, %cst_40 [1] : vector<4x256xf32> to vector<4xf32>
      %57 = vector.shape_cast %56 : vector<4xf32> to vector<4x1xf32>
      %c0_41 = arith.constant 0 : index
      %c0_42 = arith.constant 0 : index
      %c0_43 = arith.constant 0 : index
      %58 = vector.load %arg6[%c0_41, %c0_42, %c0_43] : memref<1x4x1xf32, #tpu.memory_space<vmem>>, vector<1x4x1xf32>
      %59 = vector.shape_cast %58 : vector<1x4x1xf32> to vector<4x1xf32>
      %60 = vector.shape_cast %57 : vector<4x1xf32> to vector<1x4x1xf32>
      tpu.vector_store %arg6[%c0_41, %c0_42, %c0_43], %60 {strides = array<i32>} : memref<1x4x1xf32, #tpu.memory_space<vmem>>, vector<1x4x1xf32>,
      %c0_44 = arith.constant 0 : index
      %c0_45 = arith.constant 0 : index
      %61 = vector.load %arg11[%c0_44, %c0_45] : memref<1x256xf32, #tpu.memory_space<vmem>>, vector<1x256xf32>
      %cst_46 = arith.constant dense<0.000000e+00> : vector<1xf32>
      %62 = vector.multi_reduction <add>, %61, %cst_46 [1] : vector<1x256xf32> to vector<1xf32>
      %63 = vector.shape_cast %62 : vector<1xf32> to vector<1x1xf32>
      %c0_47 = arith.constant 0 : index
      %c0_48 = arith.constant 0 : index
      %c0_49 = arith.constant 0 : index
      %64 = vector.load %arg7[%c0_47, %c0_48, %c0_49] : memref<1x1x1xf32, #tpu.memory_space<vmem>>, vector<1x1x1xf32>
      %65 = vector.shape_cast %64 : vector<1x1x1xf32> to vector<1x1xf32>
      %66 = vector.shape_cast %63 : vector<1x1xf32> to vector<1x1x1xf32>
      tpu.vector_store %arg7[%c0_47, %c0_48, %c0_49], %66 {strides = array<i32>} : memref<1x1x1xf32, #tpu.memory_space<vmem>>, vector<1x1x1xf32>,
    } else {
    }
    return
  }
  func.func @transform_0(%arg0: i32, %arg1: i32) -> (i32, i32, i32) {
    %c0_i32 = arith.constant 0 : i32
    %c0_i32_0 = arith.constant 0 : i32
    return %arg0, %c0_i32, %arg1 : i32, i32, i32
  }
  func.func @transform_1(%arg0: i32, %arg1: i32) -> (i32, i32, i32) {
    %c0_i32 = arith.constant 0 : i32
    %c0_i32_0 = arith.constant 0 : i32
    return %arg0, %c0_i32, %arg1 : i32, i32, i32
  }
  func.func @transform_2(%arg0: i32, %arg1: i32) -> (i32, i32, i32) {
    %c0_i32 = arith.constant 0 : i32
    %c0_i32_0 = arith.constant 0 : i32
    %c0_i32_1 = arith.constant 0 : i32
    return %arg0, %c0_i32, %c0_i32_0 : i32, i32, i32
  }
  func.func @transform_3(%arg0: i32, %arg1: i32) -> (i32, i32, i32) {
    %c0_i32 = arith.constant 0 : i32
    %c0_i32_0 = arith.constant 0 : i32
    %c0_i32_1 = arith.constant 0 : i32
    return %arg0, %c0_i32, %c0_i32_0 : i32, i32, i32
  }
  func.func @transform_4(%arg0: i32, %arg1: i32) -> (i32, i32, i32) {
    %c0_i32 = arith.constant 0 : i32
    %c0_i32_0 = arith.constant 0 : i32
    %c0_i32_1 = arith.constant 0 : i32
    return %arg0, %c0_i32, %c0_i32_0 : i32, i32, i32
  }
  func.func @transform_5(%arg0: i32, %arg1: i32) -> (i32, i32, i32) {
    %c0_i32 = arith.constant 0 : i32
    %c0_i32_0 = arith.constant 0 : i32
    %c0_i32_1 = arith.constant 0 : i32
    return %arg0, %c0_i32, %c0_i32_0 : i32, i32, i32
  }
}

</mosaic_0001>

<llo_original>
// kernel: tpu_custom_call.1
$region0: #{tpu_custom_call.1}
  #allocation0 [shape = 'u32[]', space=smem, size = 0x4, offset = 0x4, fixed_abs, tag = 'smem constant byte address 0x4 - core index']
  #allocation1 [shape = 'u32[144,128]{1,0:T(1,128)}', space=vmem, size = 0x12000, scoped, tag = 'internal scratch']
  #allocation2 [shape = 'f32[4,256]{1,0:T(4,128)}', space=vmem, size = 0x1000, scoped, tag = 'scratch operand']
  #allocation3 [shape = 'f32[4,256]{1,0:T(4,128)}', space=vmem, size = 0x1000, scoped, tag = 'scratch operand']
  #allocation4 [shape = 'f32[4,256]{1,0:T(4,128)}', space=vmem, size = 0x1000, scoped, tag = 'scratch operand']
  #allocation5 [shape = 'f32[1,256]{1,0:T(1,128)}', space=vmem, size = 0x400, scoped, tag = 'scratch operand']
  %s0 = inlined_call_operand.hbm [shape: f32[2,4,256], index: 0, kind: input, shape index: {}]
  %s1 = inlined_call_operand.hbm [shape: s32[2,1,256], index: 1, kind: input, shape index: {}]
  %s2 = inlined_call_operand.vmem [shape: f32[2,4,1], index: 2, kind: output, shape index: {0}]
  %s3 = inlined_call_operand.vmem [shape: f32[2,4,1], index: 3, kind: output, shape index: {1}]
  %s4 = inlined_call_operand.vmem [shape: f32[2,4,1], index: 4, kind: output, shape index: {2}]
  %s5 = inlined_call_operand.vmem [shape: f32[2,1,1], index: 5, kind: output, shape index: {3}]
  %6 = xla_tuple %s2, %s3, %s4, %s5
  %s7 = sld [smem:[#allocation0]]
  $region81: #{tpu_custom_call.1} parent=0
    _
  %s9 = ssub.s32 1, %s7
  %s10 = scalar_select 0, %s9, %s7
  $region1: #{tpu_custom_call.1} parent=0
    #allocation6 [shape = 'u8[8192]{0}', space=vmem, size = 0x2000, scoped, tag = 'input window, operand 0']
    #allocation7 [shape = 's32[2]{0}', space=sflag, size = 0x8, scoped, tag = 'scoped memory for tpu_custom_call.1']
    #allocation8 [shape = 'u8[2048]{0}', space=vmem, size = 0x800, scoped, tag = 'input window, operand 1']
    #allocation9 [shape = 's32[2]{0}', space=sflag, size = 0x8, scoped, tag = 'scoped memory for tpu_custom_call.1']
    %11 = vsyncpa [#allocation7], 0
    %s12 = scalar_lea.sflag [#allocation7], 1
    %13 = vsyncpa %s12, 0
    %14 = vsyncpa [#allocation9], 0
    %s15 = scalar_lea.sflag [#allocation9], 1
    %16 = vsyncpa %s15, 0
    loop: start=0, step=1, limit=4
    $region2: #{tpu_custom_call.1} parent=1 // loop_pre_header
      _
    $region3: #{tpu_custom_call.1} parent=1 // loop_header
      %s18 = sphi 0, %s22
      %p19 = scmp.ge.s32.totalorder %s18, 4
      %s25 = sphi 0, %s37
      %s26 = sphi 0, %s33
      %s27 = sphi 0, %s25
      %s28 = sphi 0, %s26
      %s29 = sphi 0, %s27
      %s30 = sphi 0, %s28
      %s42 = sphi 0, %s44
      %s45 = sphi 0, %s42
      %s46 = sphi 0, %s45
      %s62 = sphi 0, %s46
      %s70 = sphi 0, %s72
      %s73 = sphi 0, %s70
      %s74 = sphi 0, %s73
      %s90 = sphi 0, %s74
      %s96 = sphi 0, %s98
      %s99 = sphi 0, %s96
      %s100 = sphi 0, %s99
      %s116 = sphi 0, %s100
      %s122 = sphi 0, %s124
      %s125 = sphi 0, %s122
      %s126 = sphi 0, %s125
      %s142 = sphi 0, %s126
      %s148 = sphi 0, %s150
      %s151 = sphi 0, %s148
      %s152 = sphi 0, %s151
      %s168 = sphi 0, %s152
      %s174 = sphi 0, %s176
      %s177 = sphi 0, %s174
      %s178 = sphi 0, %s177
      %s194 = sphi 0, %s178
    $region4: #{tpu_custom_call.1} parent=1 // loop_header_branch
      %21 = sbr.rel (%p19) target = $region8
    $region5: #{tpu_custom_call.1} parent=1 // loop_body
      %s23 = ssub.s32 %s18, 1
      %s24 = ssub.s32 %s18, 2
      %s31 = sadd.s32 1, %s26
      %p32 = scmp.ge.s32.totalorder %s31, 1
      %s33 = scalar_select %p32, 0, %s31
      %s34 = sadd.s32 1, %s25
      %s35 = scalar_select %p32, %s34, %s25
      %p36 = scmp.ge.s32.totalorder %s35, 2
      %s37 = scalar_select %p36, 0, %s35
      %s38 = ssub.s32 %s25, %s37
      %s39 = ssub.s32 %s26, %s33
      %s40 = sor.u32 %s38, %s39
      %p41 = scmp.eq.s32.totalorder %s40, 0
      %s43 = sadd.s32 %s42, 1
      %s44 = scalar_select %p41, %s42, %s43
      %p47 = pneg %p41
      %p48 = scmp.eq.s32.totalorder %s18, 1
      %p49 = por %p47, %p48
      %p50 = scmp.ne.s32.totalorder %s42, %s45
      %p51 = scmp.eq.s32.totalorder %s18, 0
      %p52 = por %p50, %p51
      %p53 = scmp.ne.s32.totalorder %s42, %s45
      %p54 = scmp.eq.s32.totalorder %s23, 1
      %p55 = por %p53, %p54
      %p56 = scmp.ne.s32.totalorder %s45, %s46
      %p57 = scmp.eq.s32.totalorder %s23, 0
      %p58 = por %p56, %p57
      %p59 = scmp.ne.s32.totalorder %s45, %s46
      %p60 = scmp.eq.s32.totalorder %s24, 1
      %p61 = por %p59, %p60
      %p63 = scmp.ne.s32.totalorder %s46, %s62
      %p64 = scmp.eq.s32.totalorder %s24, 0
      %p65 = por %p63, %p64
      %s66 = ssub.s32 %s25, %s37
      %s67 = ssub.s32 %s26, %s33
      %s68 = sor.u32 %s66, %s67
      %p69 = scmp.eq.s32.totalorder %s68, 0
      %s71 = sadd.s32 %s70, 1
      %s72 = scalar_select %p69, %s70, %s71
      %p75 = pneg %p69
      %p76 = scmp.eq.s32.totalorder %s18, 1
      %p77 = por %p75, %p76
      %p78 = scmp.ne.s32.totalorder %s70, %s73
      %p79 = scmp.eq.s32.totalorder %s18, 0
      %p80 = por %p78, %p79
      %p81 = scmp.ne.s32.totalorder %s70, %s73
      %p82 = scmp.eq.s32.totalorder %s23, 1
      %p83 = por %p81, %p82
      %p84 = scmp.ne.s32.totalorder %s73, %s74
      %p85 = scmp.eq.s32.totalorder %s23, 0
      %p86 = por %p84, %p85
      %p87 = scmp.ne.s32.totalorder %s73, %s74
      %p88 = scmp.eq.s32.totalorder %s24, 1
      %p89 = por %p87, %p88
      %p91 = scmp.ne.s32.totalorder %s74, %s90
      %p92 = scmp.eq.s32.totalorder %s24, 0
      %p93 = por %p91, %p92
      %s94 = ssub.s32 %s25, %s37
      %p95 = scmp.eq.s32.totalorder %s94, 0
      %s97 = sadd.s32 %s96, 1
      %s98 = scalar_select %p95, %s96, %s97
      %p101 = pneg %p95
      %p102 = scmp.eq.s32.totalorder %s18, 1
      %p103 = por %p101, %p102
      %p104 = scmp.ne.s32.totalorder %s96, %s99
      %p105 = scmp.eq.s32.totalorder %s18, 0
      %p106 = por %p104, %p105
      %p107 = scmp.ne.s32.totalorder %s96, %s99
      %p108 = scmp.eq.s32.totalorder %s23, 1
      %p109 = por %p107, %p108
      %p110 = scmp.ne.s32.totalorder %s99, %s100
      %p111 = scmp.eq.s32.totalorder %s23, 0
      %p112 = por %p110, %p111
      %p113 = scmp.ne.s32.totalorder %s99, %s100
      %p114 = scmp.eq.s32.totalorder %s24, 1
      %p115 = por %p113, %p114
      %p117 = scmp.ne.s32.totalorder %s100, %s116
      %p118 = scmp.eq.s32.totalorder %s24, 0
      %p119 = por %p117, %p118
      %s120 = ssub.s32 %s25, %s37
      %p121 = scmp.eq.s32.totalorder %s120, 0
      %s123 = sadd.s32 %s122, 1
      %s124 = scalar_select %p121, %s122, %s123
      %p127 = pneg %p121
      %p128 = scmp.eq.s32.totalorder %s18, 1
      %p129 = por %p127, %p128
      %p130 = scmp.ne.s32.totalorder %s122, %s125
      %p131 = scmp.eq.s32.totalorder %s18, 0
      %p132 = por %p130, %p131
      %p133 = scmp.ne.s32.totalorder %s122, %s125
      %p134 = scmp.eq.s32.totalorder %s23, 1
      %p135 = por %p133, %p134
      %p136 = scmp.ne.s32.totalorder %s125, %s126
      %p137 = scmp.eq.s32.totalorder %s23, 0
      %p138 = por %p136, %p137
      %p139 = scmp.ne.s32.totalorder %s125, %s126
      %p140 = scmp.eq.s32.totalorder %s24, 1
      %p141 = por %p139, %p140
      %p143 = scmp.ne.s32.totalorder %s126, %s142
      %p144 = scmp.eq.s32.totalorder %s24, 0
      %p145 = por %p143, %p144
      %s146 = ssub.s32 %s25, %s37
      %p147 = scmp.eq.s32.totalorder %s146, 0
      %s149 = sadd.s32 %s148, 1
      %s150 = scalar_select %p147, %s148, %s149
      %p153 = pneg %p147
      %p154 = scmp.eq.s32.totalorder %s18, 1
      %p155 = por %p153, %p154
      %p156 = scmp.ne.s32.totalorder %s148, %s151
      %p157 = scmp.eq.s32.totalorder %s18, 0
      %p158 = por %p156, %p157
      %p159 = scmp.ne.s32.totalorder %s148, %s151
      %p160 = scmp.eq.s32.totalorder %s23, 1
      %p161 = por %p159, %p160
      %p162 = scmp.ne.s32.totalorder %s151, %s152
      %p163 = scmp.eq.s32.totalorder %s23, 0
      %p164 = por %p162, %p163
      %p165 = scmp.ne.s32.totalorder %s151, %s152
      %p166 = scmp.eq.s32.totalorder %s24, 1
      %p167 = por %p165, %p166
      %p169 = scmp.ne.s32.totalorder %s152, %s168
      %p170 = scmp.eq.s32.totalorder %s24, 0
      %p171 = por %p169, %p170
      %s172 = ssub.s32 %s25, %s37
      %p173 = scmp.eq.s32.totalorder %s172, 0
      %s175 = sadd.s32 %s174, 1
      %s176 = scalar_select %p173, %s174, %s175
      %p179 = pneg %p173
      %p180 = scmp.eq.s32.totalorder %s18, 1
      %p181 = por %p179, %p180
      %p182 = scmp.ne.s32.totalorder %s174, %s177
      %p183 = scmp.eq.s32.totalorder %s18, 0
      %p184 = por %p182, %p183
      %p185 = scmp.ne.s32.totalorder %s174, %s177
      %p186 = scmp.eq.s32.totalorder %s23, 1
      %p187 = por %p185, %p186
      %p188 = scmp.ne.s32.totalorder %s177, %s178
      %p189 = scmp.eq.s32.totalorder %s23, 0
      %p190 = por %p188, %p189
      %p191 = scmp.ne.s32.totalorder %s177, %s178
      %p192 = scmp.eq.s32.totalorder %s24, 1
      %p193 = por %p191, %p192
      %p195 = scmp.ne.s32.totalorder %s178, %s194
      %p196 = scmp.eq.s32.totalorder %s24, 0
      %p197 = por %p195, %p196
      %p198 = scmp.le.s32.totalorder 1, %s18
      %p199 = scmp.lt.s32.totalorder %s18, 3
      %p200 = pnand %p198, %p199
      %p201 = pneg %p200
      // Predicated region
      $region9: #{tpu_custom_call.1} parent=5 // pred_check
        _
      $region10: #{tpu_custom_call.1} parent=5 // pred_check_branch
        %203 = sbr.rel (%p200) target = $region12
      $region11: #{tpu_custom_call.1} parent=5 // pred_region
        %s204 = ssub.s32 %s18, 1
      $region12: #{tpu_custom_call.1} parent=5 // pred_fallthru
        _
      %p205 = scmp.lt.s32.totalorder %s18, 2
      // Predicated region
      $region13: #{tpu_custom_call.1} parent=5 // pred_check
        %p206 = pneg %p205
      $region14: #{tpu_custom_call.1} parent=5 // pred_check_branch
        %208 = sbr.rel (%p206) target = $region16
      $region15: #{tpu_custom_call.1} parent=5 // pred_region
        // Predicated region
        $region17: #{tpu_custom_call.1} parent=15 // pred_check
          %p209 = pneg %p52
        $region18: #{tpu_custom_call.1} parent=15 // pred_check_branch
          %211 = sbr.rel (%p209) target = $region20
        $region19: #{tpu_custom_call.1} parent=15 // pred_region
          %s212 = sand.u32 %s42, 1
          %s213 = scalar_lea.sflag [#allocation7], %s212
          %s214 = sand.u32 %s42, 1
          %s215 = smul.addr %s214, 8
          %s216 = scalar_lea.vmem [#allocation6], %s215
          %s217 = smul.u32 2, %s26
          %s219 = ssub.s32 128, 128
          %220 = vsyncadd %s213, %s219
          %s221 = smul.addr %s25, 2
          %s222 = sadd.s32 %s217, %s221
          %s223 = smul.addr %s222, 64
          %s224 = scalar_lea.hbm %s0, %s223
          %s226 = sshll.u32 %s216, 4
          %s227 = int_to_ptr.vmem [resolvable:$true] %s226
          %229 = dma.hbm_to_vmem [thread:$0]  %s224, 128, %s227, %s213
        $region20: #{tpu_custom_call.1} parent=15 // pred_fallthru
          _
        // Predicated region
        $region21: #{tpu_custom_call.1} parent=15 // pred_check
          %p230 = pneg %p80
        $region22: #{tpu_custom_call.1} parent=15 // pred_check_branch
          %232 = sbr.rel (%p230) target = $region24
        $region23: #{tpu_custom_call.1} parent=15 // pred_region
          %s233 = sand.u32 %s70, 1
          %s234 = scalar_lea.sflag [#allocation9], %s233
          %s235 = sand.u32 %s70, 1
          %s236 = smul.addr %s235, 2
          %s237 = scalar_lea.vmem [#allocation8], %s236
          %s238 = smul.u32 2, %s26
          %s240 = ssub.s32 32, 32
          %241 = vsyncadd %s234, %s240
          %s242 = smul.addr %s25, 2
          %s243 = sadd.s32 %s238, %s242
          %s244 = smul.addr %s243, 16
          %s245 = scalar_lea.hbm %s1, %s244
          %s247 = sshll.u32 %s237, 4
          %s248 = int_to_ptr.vmem [resolvable:$true] %s247
          %250 = dma.hbm_to_vmem [thread:$0]  %s245, 32, %s248, %s234
        $region24: #{tpu_custom_call.1} parent=15 // pred_fallthru
          _
      $region16: #{tpu_custom_call.1} parent=5 // pred_fallthru
        _
      %p251 = scmp.le.s32.totalorder 1, %s18
      %p252 = scmp.lt.s32.totalorder %s18, 3
      %p253 = pnand %p251, %p252
      %p254 = pneg %p253
      // Predicated region
      $region25: #{tpu_custom_call.1} parent=5 // pred_check
        _
      $region26: #{tpu_custom_call.1} parent=5 // pred_check_branch
        %256 = sbr.rel (%p253) target = $region28
      $region27: #{tpu_custom_call.1} parent=5 // pred_region
        %s257 = ssub.s32 %s18, 1
        %s258 = sand.u32 %s45, 1
        %s259 = scalar_lea.sflag [#allocation7], %s258
        %s260 = sand.u32 %s45, 1
        %s261 = smul.addr %s260, 8
        %s262 = scalar_lea.vmem [#allocation6], %s261
        // Predicated region
        $region29: #{tpu_custom_call.1} parent=27 // pred_check
          %p263 = pneg %p58
        $region30: #{tpu_custom_call.1} parent=27 // pred_check_branch
          %265 = sbr.rel (%p263) target = $region32
        $region31: #{tpu_custom_call.1} parent=27 // pred_region
          %266 = dma.done %s259, 128
        $region32: #{tpu_custom_call.1} parent=27 // pred_fallthru
          _
        %s267 = sand.u32 %s73, 1
        %s268 = scalar_lea.sflag [#allocation9], %s267
        %s269 = sand.u32 %s73, 1
        %s270 = smul.addr %s269, 2
        %s271 = scalar_lea.vmem [#allocation8], %s270
        // Predicated region
        $region33: #{tpu_custom_call.1} parent=27 // pred_check
          %p272 = pneg %p86
        $region34: #{tpu_custom_call.1} parent=27 // pred_check_branch
          %274 = sbr.rel (%p272) target = $region36
        $region35: #{tpu_custom_call.1} parent=27 // pred_region
          %275 = dma.done %s268, 32
        $region36: #{tpu_custom_call.1} parent=27 // pred_fallthru
          _
        %s276 = sand.u32 %s45, 1
        %s277 = scalar_lea.sflag [#allocation7], %s276
        %s278 = sand.u32 %s45, 1
        %s279 = smul.addr %s278, 8
        %s280 = scalar_lea.vmem [#allocation6], %s279
        %p281 = pneg %p58
        %p282 = pneg %p55
        %s283 = sand.u32 %s73, 1
        %s284 = scalar_lea.sflag [#allocation9], %s283
        %s285 = sand.u32 %s73, 1
        %s286 = smul.addr %s285, 2
        %s287 = scalar_lea.vmem [#allocation8], %s286
        %p288 = pneg %p86
        %p289 = pneg %p83
        %p290 = pneg %p112
        %p291 = pneg %p109
        %p292 = scmp.lt.s32.totalorder %s27, 1
        %s293 = scalar_select %p292, %s27, 1
        %s294 = smul.addr %s293, 4
        %s295 = scalar_lea.vmem %s2, %s294
        %p296 = pneg %p138
        %p297 = pneg %p135
        %p298 = scmp.lt.s32.totalorder %s27, 1
        %s299 = scalar_select %p298, %s27, 1
        %s300 = smul.addr %s299, 4
        %s301 = scalar_lea.vmem %s3, %s300
        %p302 = pneg %p164
        %p303 = pneg %p161
        %p304 = scmp.lt.s32.totalorder %s27, 1
        %s305 = scalar_select %p304, %s27, 1
        %s306 = smul.addr %s305, 4
        %s307 = scalar_lea.vmem %s4, %s306
        %p308 = pneg %p190
        %p309 = pneg %p187
        %p310 = scmp.lt.s32.totalorder %s27, 1
        %s311 = scalar_select %p310, %s27, 1
        %s312 = scalar_lea.vmem %s5, %s311
        %s313 = smul.u32 2, %s28
        %s314 = smul.u32 2, %s28
        %p315 = scmp.lt.s32.totalorder %s27, 1
        %s316 = scalar_select %p315, %s27, 1
        %s317 = smul.addr %s316, 4
        %s318 = scalar_lea.vmem %s2, %s317
        %p319 = scmp.lt.s32.totalorder %s27, 1
        %s320 = scalar_select %p319, %s27, 1
        %s321 = smul.addr %s320, 4
        %s322 = scalar_lea.vmem %s3, %s321
        %p323 = scmp.lt.s32.totalorder %s27, 1
        %s324 = scalar_select %p323, %s27, 1
        %s325 = smul.addr %s324, 4
        %s326 = scalar_lea.vmem %s4, %s325
        %p327 = scmp.lt.s32.totalorder %s27, 1
        %s328 = scalar_select %p327, %s27, 1
        %s329 = scalar_lea.vmem %s5, %s328
        %p330 = scmp.eq.s32.totalorder %s28, 0
        // Predicated region
        $region37: #{tpu_custom_call.1} parent=27 // pred_check
          %p331 = pneg %p330
        $region38: #{tpu_custom_call.1} parent=27 // pred_check_branch
          %333 = sbr.rel (%p331) target = $region40
        $region39: #{tpu_custom_call.1} parent=27 // pred_region
          %334 = vst [vmem:[#allocation2] sm:$0xff] 0.0
          %335 = vst [vmem:[#allocation3] sm:$0xff] 0.0
          %336 = vst [vmem:[#allocation4] sm:$0xff] 0.0
          %v337 = vlaneseq
          %vm338 = vcmp.ge.s32.totalorder %v337, 0
          %vm339 = vcmp.lt.s32.totalorder %v337, 256
          %vm340 = vmand %vm338, %vm339
          %341 = vst.msk [vmem:[#allocation5] sm:$0x3] %vm340, 0.0
        $region40: #{tpu_custom_call.1} parent=27 // pred_fallthru
          _
        %v342 = vld [vmem:[%s262] sm:$0xff]
        %v343 = vld [vmem:[%s271] sm:$0x3]
        %v344 = vlaneseq
        %v345 = vshrl.u32 %v344, 7
        %v346 = vlaneseq
        %v347 = vshrl.u32 %v346, 7
        %v348 = vsub.s32 0, %v347
        %v349 = vrot.slane %v343, %v348
        %v350 = vlaneseq
        %v351 = vshrl.u32 %v350, 7
        %v352 = vsub.s32 1, %v351
        %v353 = vrot.slane %v343, %v352
        %vm354 = vcmp.eq.s32.totalorder %v349, %v345
        %vm355 = vcmp.eq.s32.totalorder %v353, %v345
        %v356 = vsel %vm354, 1, 0
        %v357 = vsel %vm355, 1, 0
        %v358 = vcvt.s32.f32 %v356
        %v359 = vcvt.s32.f32 %v357
        %v361 = vcombine.high %v342, %v342
        %vm363 = vcmask 1043456
        %v364 = vsel %vm363, %v342, -inf
        %v365 = vrot.slane %v364, 4
        %v366 = vmax.f32 %v364, %v365
        %v367 = vrot.slane %v366, 2
        %v368 = vmax.f32 %v366, %v367
        %v369 = vrot.slane %v368, 1
        %v370 = vmax.f32 %v368, %v369
        %v371 = vsel %vm363, %v361, -inf
        %v372 = vrot.slane %v371, 4
        %v373 = vmax.f32 %v371, %v372
        %v374 = vrot.slane %v373, 2
        %v375 = vmax.f32 %v373, %v374
        %v376 = vrot.slane %v375, 1
        %v377 = vmax.f32 %v375, %v376
        %v380 = vcombine.low %v370, %v377
        %v382 = vsub.f32 %v342, %v380
        %v383 = vmul.f32 %v382, 1.442695
        %v384 = vpow.pop %v383
        %v386 = vcombine.high %v384, %v384
        %v388 = vsel %vm363, %v384, 0.0
        %v389 = vrot.slane %v388, 4
        %v390 = vadd.f32 %v388, %v389
        %v391 = vrot.slane %v390, 2
        %v392 = vadd.f32 %v390, %v391
        %v393 = vrot.slane %v392, 1
        %v394 = vadd.f32 %v392, %v393
        %v395 = vsel %vm363, %v386, 0.0
        %v396 = vrot.slane %v395, 4
        %v397 = vadd.f32 %v395, %v396
        %v398 = vrot.slane %v397, 2
        %v399 = vadd.f32 %v397, %v398
        %v400 = vrot.slane %v399, 1
        %v401 = vadd.f32 %v399, %v400
        %v404 = vcombine.low %v394, %v401
        %v406 = vrcp.pop %v404
        %v407 = vmul.f32 %v384, %v406
        %v408 = vlog2.pop %v394
        %v409 = vmul.f32 %v408, 0.6931472
        %v410 = vlog2.pop %v401
        %v411 = vmul.f32 %v410, 0.6931472
        %v412 = vadd.f32 %v409, %v370
        %v413 = vadd.f32 %v411, %v377
        %v416 = vcombine.low %v358, %v359
        %v418 = vmul.f32 %v342, %v416
        %v420 = vcombine.high %v418, %v418
        %v422 = vsel %vm363, %v418, 0.0
        %v423 = vrot.slane %v422, 4
        %v424 = vadd.f32 %v422, %v423
        %v425 = vrot.slane %v424, 2
        %v426 = vadd.f32 %v424, %v425
        %v427 = vrot.slane %v426, 1
        %v428 = vadd.f32 %v426, %v427
        %v429 = vsel %vm363, %v420, 0.0
        %v430 = vrot.slane %v429, 4
        %v431 = vadd.f32 %v429, %v430
        %v432 = vrot.slane %v431, 2
        %v433 = vadd.f32 %v431, %v432
        %v434 = vrot.slane %v433, 1
        %v435 = vadd.f32 %v433, %v434
        %v436 = vsub.f32 %v412, %v428
        %v437 = vsub.f32 %v413, %v435
        %v438 = vld [vmem:[#allocation2] sm:$0xff]
        %v439 = vmul.f32 %v407, %v416
        %v440 = vadd.f32 %v438, %v439
        %441 = vst [vmem:[#allocation2] sm:$0xff] %v440
        %v442 = vld [vmem:[#allocation3] sm:$0xff]
        %v443 = vadd.f32 %v442, %v407
        %444 = vst [vmem:[#allocation3] sm:$0xff] %v443
        %v445 = vld [vmem:[#allocation4] sm:$0xff]
        %v446 = vadd.f32 %v445, %v416
        %447 = vst [vmem:[#allocation4] sm:$0xff] %v446
        %v448 = vld [vmem:[#allocation5] sm:$0x3]
        %v451 = vcombine.low %v436, %v437
        %v453 = vunpack.c.l.s4 1966171168
        %v454 = vunpack.c.0.s8 %v453
        %v455 = vlaneseq
        %v456 = vshrl.u32 %v455, 7
        %v457 = vsub.s32 %v454, %v456
        %v458 = vrot.slane %v451, %v457
        %v460 = vunpack.c.l.s4 1966171168
        %v461 = vunpack.c.0.s8 %v460
        %v462 = vlaneseq
        %v463 = vshrl.u32 %v462, 7
        %v464 = vsub.s32 %v461, %v463
        %v465 = vrot.slane %v458, %v464
        %v467 = vadd.f32 %v448, %v465
        %v468 = vlaneseq
        %vm469 = vcmp.ge.s32.totalorder %v468, 0
        %vm470 = vcmp.lt.s32.totalorder %v468, 256
        %vm471 = vmand %vm469, %vm470
        %472 = vst.msk [vmem:[#allocation5] sm:$0x3] %vm471, %v467
        // Predicated region
        $region41: #{tpu_custom_call.1} parent=27 // pred_check
          %p473 = pneg %p330
        $region42: #{tpu_custom_call.1} parent=27 // pred_check_branch
          %475 = sbr.rel (%p473) target = $region44
        $region43: #{tpu_custom_call.1} parent=27 // pred_region
          %v476 = vld [vmem:[#allocation2] sm:$0xff]
          %v478 = vcombine.high %v476, %v476
          %v480 = vsel %vm363, %v476, 0.0
          %v481 = vsel %vm363, %v478, 0.0
          %v482 = vadd.f32 %v480, %v481
          %483 = vadd.xlane.f32.xlu0 %v482
          %v484 = vpop.xlane.xlu0 %483
          %vm485 = vcmask 3072
          %486 = vst.msk [vmem:[%s318] sm:$0xf] %vm485, %v484
          %v487 = vld [vmem:[#allocation3] sm:$0xff]
          %v489 = vcombine.high %v487, %v487
          %v491 = vsel %vm363, %v487, 0.0
          %v492 = vsel %vm363, %v489, 0.0
          %v493 = vadd.f32 %v491, %v492
          %494 = vadd.xlane.f32.xlu0 %v493
          %v495 = vpop.xlane.xlu0 %494
          %496 = vst.msk [vmem:[%s322] sm:$0xf] %vm485, %v495
          %v497 = vld [vmem:[#allocation4] sm:$0xff]
          %v499 = vcombine.high %v497, %v497
          %v501 = vsel %vm363, %v497, 0.0
          %v502 = vsel %vm363, %v499, 0.0
          %v503 = vadd.f32 %v501, %v502
          %504 = vadd.xlane.f32.xlu0 %v503
          %v505 = vpop.xlane.xlu0 %504
          %506 = vst.msk [vmem:[%s326] sm:$0xf] %vm485, %v505
          %v507 = vld [vmem:[#allocation5] sm:$0x3]
          %v509 = vlaneseq
          %v510 = vshrl.u32 %v509, 7
          %v511 = vsub.s32 0, %v510
          %v512 = vrot.slane %v507, %v511
          %v513 = vlaneseq
          %v514 = vshrl.u32 %v513, 7
          %v515 = vsub.s32 1, %v514
          %v516 = vrot.slane %v507, %v515
          %vm519 = vcmask 1040384
          %v520 = vsel %vm519, %v512, 0.0
          %v521 = vsel %vm519, %v516, 0.0
          %v522 = vadd.f32 %v520, %v521
          %523 = vadd.xlane.f32.xlu0 %v522
          %v524 = vpop.xlane.xlu0 %523
          %vm525 = vcmask 0
          %526 = vst.msk [vmem:[%s329] sm:$0x1] %vm525, %v524
        $region44: #{tpu_custom_call.1} parent=27 // pred_fallthru
          _
        %p527 = scmp.lt.s32.totalorder %s27, 1
        %s528 = scalar_select %p527, %s27, 1
        %s529 = smul.addr %s528, 4
        %s530 = scalar_lea.vmem %s2, %s529
        %p531 = scmp.lt.s32.totalorder %s27, 1
        %s532 = scalar_select %p531, %s27, 1
        %s533 = smul.addr %s532, 4
        %s534 = scalar_lea.vmem %s3, %s533
        %p535 = scmp.lt.s32.totalorder %s27, 1
        %s536 = scalar_select %p535, %s27, 1
        %s537 = smul.addr %s536, 4
        %s538 = scalar_lea.vmem %s4, %s537
        %p539 = scmp.lt.s32.totalorder %s27, 1
        %s540 = scalar_select %p539, %s27, 1
        %s541 = scalar_lea.vmem %s5, %s540
        // Predicated region
        $region45: #{tpu_custom_call.1} parent=27 // pred_check
          %p542 = pneg %p109
        $region46: #{tpu_custom_call.1} parent=27 // pred_check_branch
          %544 = sbr.rel (%p542) target = $region48
        $region47: #{tpu_custom_call.1} parent=27 // pred_region
          _
        $region48: #{tpu_custom_call.1} parent=27 // pred_fallthru
          _
        // Predicated region
        $region49: #{tpu_custom_call.1} parent=27 // pred_check
          %p545 = pneg %p135
        $region50: #{tpu_custom_call.1} parent=27 // pred_check_branch
          %547 = sbr.rel (%p545) target = $region52
        $region51: #{tpu_custom_call.1} parent=27 // pred_region
          _
        $region52: #{tpu_custom_call.1} parent=27 // pred_fallthru
          _
        // Predicated region
        $region53: #{tpu_custom_call.1} parent=27 // pred_check
          %p548 = pneg %p161
        $region54: #{tpu_custom_call.1} parent=27 // pred_check_branch
          %550 = sbr.rel (%p548) target = $region56
        $region55: #{tpu_custom_call.1} parent=27 // pred_region
          _
        $region56: #{tpu_custom_call.1} parent=27 // pred_fallthru
          _
        // Predicated region
        $region57: #{tpu_custom_call.1} parent=27 // pred_check
          %p551 = pneg %p187
        $region58: #{tpu_custom_call.1} parent=27 // pred_check_branch
          %553 = sbr.rel (%p551) target = $region60
        $region59: #{tpu_custom_call.1} parent=27 // pred_region
          _
        $region60: #{tpu_custom_call.1} parent=27 // pred_fallthru
          _
      $region28: #{tpu_custom_call.1} parent=5 // pred_fallthru
        _
      %p554 = scmp.le.s32.totalorder 2, %s18
      // Predicated region
      $region61: #{tpu_custom_call.1} parent=5 // pred_check
        %p555 = pneg %p554
      $region62: #{tpu_custom_call.1} parent=5 // pred_check_branch
        %557 = sbr.rel (%p555) target = $region64
      $region63: #{tpu_custom_call.1} parent=5 // pred_region
        %s558 = ssub.s32 %s18, 2
        // Predicated region
        $region65: #{tpu_custom_call.1} parent=63 // pred_check
          %p559 = pneg %p115
        $region66: #{tpu_custom_call.1} parent=63 // pred_check_branch
          %561 = sbr.rel (%p559) target = $region68
        $region67: #{tpu_custom_call.1} parent=63 // pred_region
          %p562 = scmp.lt.s32.totalorder %s29, 1
          %s563 = scalar_select %p562, %s29, 1
          %s564 = smul.addr %s563, 4
          %s565 = scalar_lea.vmem %s2, %s564
        $region68: #{tpu_custom_call.1} parent=63 // pred_fallthru
          _
        // Predicated region
        $region69: #{tpu_custom_call.1} parent=63 // pred_check
          %p566 = pneg %p141
        $region70: #{tpu_custom_call.1} parent=63 // pred_check_branch
          %568 = sbr.rel (%p566) target = $region72
        $region71: #{tpu_custom_call.1} parent=63 // pred_region
          %p569 = scmp.lt.s32.totalorder %s29, 1
          %s570 = scalar_select %p569, %s29, 1
          %s571 = smul.addr %s570, 4
          %s572 = scalar_lea.vmem %s3, %s571
        $region72: #{tpu_custom_call.1} parent=63 // pred_fallthru
          _
        // Predicated region
        $region73: #{tpu_custom_call.1} parent=63 // pred_check
          %p573 = pneg %p167
        $region74: #{tpu_custom_call.1} parent=63 // pred_check_branch
          %575 = sbr.rel (%p573) target = $region76
        $region75: #{tpu_custom_call.1} parent=63 // pred_region
          %p576 = scmp.lt.s32.totalorder %s29, 1
          %s577 = scalar_select %p576, %s29, 1
          %s578 = smul.addr %s577, 4
          %s579 = scalar_lea.vmem %s4, %s578
        $region76: #{tpu_custom_call.1} parent=63 // pred_fallthru
          _
        // Predicated region
        $region77: #{tpu_custom_call.1} parent=63 // pred_check
          %p580 = pneg %p193
        $region78: #{tpu_custom_call.1} parent=63 // pred_check_branch
          %582 = sbr.rel (%p580) target = $region80
        $region79: #{tpu_custom_call.1} parent=63 // pred_region
          %p583 = scmp.lt.s32.totalorder %s29, 1
          %s584 = scalar_select %p583, %s29, 1
          %s585 = scalar_lea.vmem %s5, %s584
        $region80: #{tpu_custom_call.1} parent=63 // pred_fallthru
          _
      $region64: #{tpu_custom_call.1} parent=5 // pred_fallthru
        _
    $region6: #{tpu_custom_call.1} parent=1 // loop_footer
      %s22 = sadd.s32 1, %s18
    $region7: #{tpu_custom_call.1} parent=1 // loop_footer_branch
      %17 = sbr.rel target = $region3
    $region8: #{tpu_custom_call.1} parent=1 // loop_exit
      _
    %586 = vsyncpa [#allocation7], 1
    %s587 = scalar_lea.sflag [#allocation7], 1
    %588 = vsyncpa %s587, 1
    %589 = vsyncpa [#allocation9], 1
    %s590 = scalar_lea.sflag [#allocation9], 1
    %591 = vsyncpa %s590, 1

</llo_original>
